<compile_context>
chip_gen: v7x
topology: tpu7x:2x2x1
jax: 0.10.0
libtpu: 0.0.40
codegen_flags: <defaults>
</compile_context>

<pallas_src>
import jax
import jax.numpy as jnp
from jax import lax
from jax.experimental import pallas as pl
from jax.experimental.pallas import tpu as pltpu


def pointwise_kernel(ids_ref, su_ref, si_ref, o_ref):
    """One (ROWS, TB) batch slab -> (ROWS, TB) scores.

    ids_ref : (2, ROWS, TB) int32   [0] = user ids, [1] = item ids
    su_ref  : (NU, 1) f32           per-user-row score  <U[u], w_u> + b
    si_ref  : (NI, 1) f32           per-item-row score  <I[i], w_i>
    o_ref   : (ROWS, TB) f32        output scores (dense full-vreg store)
    """
    nu = su_ref.shape[0]
    ni = si_ref.shape[0]
    rows, tb = o_ref.shape

    ids = ids_ref[...]                      # (2, ROWS, TB)
    uid = ids[0]                            # (ROWS, TB)
    iid = ids[1]                            # (ROWS, TB)

    s_u = su_ref[...]                       # (NU, 1), bias already folded in
    s_i = si_ref[...]                       # (NI, 1)
    u_iota = lax.broadcasted_iota(jnp.int32, (nu, tb), 0)
    i_iota = lax.broadcasted_iota(jnp.int32, (ni, tb), 0)

    # Gather-by-select, one batch sublane-row at a time (static 8-iteration
    # unrolled loop; per-row live set is (NU+NI, TB) masks, well inside vregs).
    out_rows = []
    for r in range(rows):
        uid_r = uid[r:r + 1, :]             # (1, TB), sublane-broadcast below
        iid_r = iid[r:r + 1, :]
        y_u = jnp.sum(jnp.where(u_iota == uid_r, s_u, 0.0),
                      axis=0, keepdims=True)             # (1, TB)
        y_i = jnp.sum(jnp.where(i_iota == iid_r, s_i, 0.0),
                      axis=0, keepdims=True)             # (1, TB)
        out_rows.append(y_u + y_i)
    o_ref[...] = jnp.concatenate(out_rows, axis=0)       # dense (ROWS, TB) store


def pointwise_forward(user_ids, item_ids, user_table, item_table, w, b,
                      *, tb=128, rows=8):
    """Forward pass of PointwiseModel.

    user_ids, item_ids : (B,) int32
    user_table         : (NU, D) f32 embedding table
    item_table         : (NI, D) f32 embedding table
    w                  : (1, 2D) f32 fc weight (torch (out_features, in_features))
    b                  : (1,)   f32 fc bias
    returns            : (B, 1) f32
    """
    assert rows % 8 == 0 and tb % 128 == 0
    B = user_ids.shape[0]
    NU, D = user_table.shape
    NI = item_table.shape[0]

    # Grid-invariant weight fold (exact reassociation of the rank-1 fc):
    #   score(u, i) = <U[u], w_u> + <I[i], w_i> + b = s_u[u] + s_i[i]
    w32 = w.astype(jnp.float32)
    s_u = (user_table.astype(jnp.float32) @ w32[0, :D]
           + b.astype(jnp.float32)[0]).reshape(NU, 1)
    s_i = (item_table.astype(jnp.float32) @ w32[0, D:]).reshape(NI, 1)

    # Pad the batch to whole (rows, tb) slabs; pad rows use id 0 (valid) and
    # are sliced off after the call.
    slab = rows * tb
    pad = (-B) % slab
    uid = jnp.pad(user_ids.astype(jnp.int32), (0, pad))
    iid = jnp.pad(item_ids.astype(jnp.int32), (0, pad))
    n_tiles = (B + pad) // slab
    ids = jnp.stack([uid.reshape(n_tiles, rows, tb),
                     iid.reshape(n_tiles, rows, tb)],
                    axis=1)                               # (n_tiles, 2, rows, tb)

    grid_spec = pltpu.PrefetchScalarGridSpec(
        num_scalar_prefetch=0,
        grid=(n_tiles,),
        in_specs=[
            pl.BlockSpec((None, 2, rows, tb), lambda t: (t, 0, 0, 0)),  # id slab
            pl.BlockSpec((NU, 1), lambda t: (0, 0)),      # s_u (VMEM resident)
            pl.BlockSpec((NI, 1), lambda t: (0, 0)),      # s_i (VMEM resident)
        ],
        out_specs=pl.BlockSpec((None, rows, tb), lambda t: (t, 0, 0)),
    )
    out = pl.pallas_call(
        pointwise_kernel,
        out_shape=jax.ShapeDtypeStruct((n_tiles, rows, tb), jnp.float32),
        grid_spec=grid_spec,
        compiler_params=pltpu.CompilerParams(
            dimension_semantics=("parallel",)),           # slabs are independent
    )(ids, s_u, s_i)

    return out.reshape(-1)[:B].reshape(B, 1)


if __name__ == "__main__":
    # Small, deterministic synthetic parameters (mirrors the module __init__).
    num_users, num_items, embedding_dim = 64, 128, 32
    batch = 8

    key = jax.random.PRNGKey(0)
    k_u, k_i, k_w, k_b, k_uid, k_iid = jax.random.split(key, 6)

    # nn.Embedding default init: N(0, 1)
    user_table = jax.random.normal(k_u, (num_users, embedding_dim), jnp.float32)
    item_table = jax.random.normal(k_i, (num_items, embedding_dim), jnp.float32)

    # nn.Linear(embedding_dim*2, 1) default init: U(-1/sqrt(fan_in), 1/sqrt(fan_in))
    fan_in = 2 * embedding_dim
    bound = 1.0 / jnp.sqrt(jnp.float32(fan_in))
    w = jax.random.uniform(k_w, (1, fan_in), jnp.float32, -bound, bound)  # torch (out, in)
    b = jax.random.uniform(k_b, (1,), jnp.float32, -bound, bound)

    user_ids = jax.random.randint(k_uid, (batch,), 0, num_users, jnp.int32)
    item_ids = jax.random.randint(k_iid, (batch,), 0, num_items, jnp.int32)

    out = pointwise_forward(user_ids, item_ids, user_table, item_table, w, b)
    out = jax.block_until_ready(out)

    # Pure-JAX reference of the torch forward pass.
    u_e = user_table[user_ids]                        # (B, D)
    i_e = item_table[item_ids]                        # (B, D)
    x = jnp.concatenate([u_e, i_e], axis=1)           # (B, 2D)
    ref = x @ w.T + b                                 # (B, 1)

    assert out.shape == (batch, 1)
    assert jnp.allclose(out, ref, atol=1e-5, rtol=1e-5), (out, ref)
    print("KERNEL_OK")
</pallas_src>

<mosaic_0001>
module attributes {stable_mosaic.version = 11 : i64} {
  func.func @pointwise_kernel(%arg0: i32, %arg1: memref<1x2x8x128xi32, #tpu.memory_space<vmem>>, %arg2: memref<64x1xf32, #tpu.memory_space<vmem>>, %arg3: memref<128x1xf32, #tpu.memory_space<vmem>>, %arg4: memref<1x8x128xf32, #tpu.memory_space<vmem>>) attributes {dimension_semantics = [#tpu.dimension_semantics<parallel>], iteration_bounds = array<i64: 1>, scalar_prefetch = 0 : i64, scratch_operands = 0 : i64, tpu.core_type = #tpu.core_type<tc>, window_params = [{transform_indices = @transform_0, window_bounds = array<i64: 1, 2, 8, 128>}, {pipeline_mode = #tpu.pipeline_mode<synchronous>, transform_indices = @transform_1, window_bounds = array<i64: 64, 1>}, {pipeline_mode = #tpu.pipeline_mode<synchronous>, transform_indices = @transform_2, window_bounds = array<i64: 128, 1>}, {transform_indices = @transform_3, window_bounds = array<i64: 1, 8, 128>}]} {
    %c0 = arith.constant 0 : index
    %c0_0 = arith.constant 0 : index
    %c0_1 = arith.constant 0 : index
    %c0_2 = arith.constant 0 : index
    %0 = vector.load %arg1[%c0, %c0_0, %c0_1, %c0_2] : memref<1x2x8x128xi32, #tpu.memory_space<vmem>>, vector<1x2x8x128xi32>
    %1 = vector.shape_cast %0 : vector<1x2x8x128xi32> to vector<2x8x128xi32>
    %2 = vector.extract_strided_slice %1 {offsets = [0, 0, 0], sizes = [1, 8, 128], strides = [1, 1, 1]} : vector<2x8x128xi32> to vector<1x8x128xi32>
    %3 = vector.shape_cast %2 : vector<1x8x128xi32> to vector<8x128xi32>
    %4 = vector.extract_strided_slice %1 {offsets = [1, 0, 0], sizes = [1, 8, 128], strides = [1, 1, 1]} : vector<2x8x128xi32> to vector<1x8x128xi32>
    %5 = vector.shape_cast %4 : vector<1x8x128xi32> to vector<8x128xi32>
    %c0_3 = arith.constant 0 : index
    %c0_4 = arith.constant 0 : index
    %6 = vector.load %arg2[%c0_3, %c0_4] : memref<64x1xf32, #tpu.memory_space<vmem>>, vector<64x1xf32>
    %c0_5 = arith.constant 0 : index
    %c0_6 = arith.constant 0 : index
    %7 = vector.load %arg3[%c0_5, %c0_6] : memref<128x1xf32, #tpu.memory_space<vmem>>, vector<128x1xf32>
    %8 = tpu.iota {dimensions = array<i32: 0>} : vector<64x128xi32>
    %9 = tpu.iota {dimensions = array<i32: 0>} : vector<128x128xi32>
    %10 = vector.extract_strided_slice %3 {offsets = [0, 0], sizes = [1, 128], strides = [1, 1]} : vector<8x128xi32> to vector<1x128xi32>
    %11 = vector.extract_strided_slice %5 {offsets = [0, 0], sizes = [1, 128], strides = [1, 1]} : vector<8x128xi32> to vector<1x128xi32>
    %12 = vector.broadcast %10 : vector<1x128xi32> to vector<64x128xi32>
    %13 = arith.cmpi eq, %8, %12 : vector<64x128xi32>
    %cst = arith.constant 0.000000e+00 : f32
    %14 = vector.shape_cast %6 : vector<64x1xf32> to vector<64x1xf32>
    %15 = vector.broadcast %14 : vector<64x1xf32> to vector<64x128xf32>
    %16 = vector.broadcast %cst : f32 to vector<64x128xf32>
    %17 = arith.select %13, %15, %16 : vector<64x128xi1>, vector<64x128xf32>
    %cst_7 = arith.constant dense<0.000000e+00> : vector<128xf32>
    %18 = vector.multi_reduction <add>, %17, %cst_7 [0] : vector<64x128xf32> to vector<128xf32>
    %19 = vector.shape_cast %18 : vector<128xf32> to vector<1x128xf32>
    %20 = vector.broadcast %11 : vector<1x128xi32> to vector<128x128xi32>
    %21 = arith.cmpi eq, %9, %20 : vector<128x128xi32>
    %cst_8 = arith.constant 0.000000e+00 : f32
    %22 = vector.shape_cast %7 : vector<128x1xf32> to vector<128x1xf32>
    %23 = vector.broadcast %22 : vector<128x1xf32> to vector<128x128xf32>
    %24 = vector.broadcast %cst_8 : f32 to vector<128x128xf32>
    %25 = arith.select %21, %23, %24 : vector<128x128xi1>, vector<128x128xf32>
    %cst_9 = arith.constant dense<0.000000e+00> : vector<128xf32>
    %26 = vector.multi_reduction <add>, %25, %cst_9 [0] : vector<128x128xf32> to vector<128xf32>
    %27 = vector.shape_cast %26 : vector<128xf32> to vector<1x128xf32>
    %28 = arith.addf %19, %27 : vector<1x128xf32>
    %29 = vector.extract_strided_slice %3 {offsets = [1, 0], sizes = [1, 128], strides = [1, 1]} : vector<8x128xi32> to vector<1x128xi32>
    %30 = vector.extract_strided_slice %5 {offsets = [1, 0], sizes = [1, 128], strides = [1, 1]} : vector<8x128xi32> to vector<1x128xi32>
    %31 = vector.broadcast %29 : vector<1x128xi32> to vector<64x128xi32>
    %32 = arith.cmpi eq, %8, %31 : vector<64x128xi32>
    %cst_10 = arith.constant 0.000000e+00 : f32
    %33 = vector.shape_cast %6 : vector<64x1xf32> to vector<64x1xf32>
    %34 = vector.broadcast %33 : vector<64x1xf32> to vector<64x128xf32>
    %35 = vector.broadcast %cst_10 : f32 to vector<64x128xf32>
    %36 = arith.select %32, %34, %35 : vector<64x128xi1>, vector<64x128xf32>
    %cst_11 = arith.constant dense<0.000000e+00> : vector<128xf32>
    %37 = vector.multi_reduction <add>, %36, %cst_11 [0] : vector<64x128xf32> to vector<128xf32>
    %38 = vector.shape_cast %37 : vector<128xf32> to vector<1x128xf32>
    %39 = vector.broadcast %30 : vector<1x128xi32> to vector<128x128xi32>
    %40 = arith.cmpi eq, %9, %39 : vector<128x128xi32>
    %cst_12 = arith.constant 0.000000e+00 : f32
    %41 = vector.shape_cast %7 : vector<128x1xf32> to vector<128x1xf32>
    %42 = vector.broadcast %41 : vector<128x1xf32> to vector<128x128xf32>
    %43 = vector.broadcast %cst_12 : f32 to vector<128x128xf32>
    %44 = arith.select %40, %42, %43 : vector<128x128xi1>, vector<128x128xf32>
    %cst_13 = arith.constant dense<0.000000e+00> : vector<128xf32>
    %45 = vector.multi_reduction <add>, %44, %cst_13 [0] : vector<128x128xf32> to vector<128xf32>
    %46 = vector.shape_cast %45 : vector<128xf32> to vector<1x128xf32>
    %47 = arith.addf %38, %46 : vector<1x128xf32>
    %48 = vector.extract_strided_slice %3 {offsets = [2, 0], sizes = [1, 128], strides = [1, 1]} : vector<8x128xi32> to vector<1x128xi32>
    %49 = vector.extract_strided_slice %5 {offsets = [2, 0], sizes = [1, 128], strides = [1, 1]} : vector<8x128xi32> to vector<1x128xi32>
    %50 = vector.broadcast %48 : vector<1x128xi32> to vector<64x128xi32>
    %51 = arith.cmpi eq, %8, %50 : vector<64x128xi32>
    %cst_14 = arith.constant 0.000000e+00 : f32
    %52 = vector.shape_cast %6 : vector<64x1xf32> to vector<64x1xf32>
    %53 = vector.broadcast %52 : vector<64x1xf32> to vector<64x128xf32>
    %54 = vector.broadcast %cst_14 : f32 to vector<64x128xf32>
    %55 = arith.select %51, %53, %54 : vector<64x128xi1>, vector<64x128xf32>
    %cst_15 = arith.constant dense<0.000000e+00> : vector<128xf32>
    %56 = vector.multi_reduction <add>, %55, %cst_15 [0] : vector<64x128xf32> to vector<128xf32>
    %57 = vector.shape_cast %56 : vector<128xf32> to vector<1x128xf32>
    %58 = vector.broadcast %49 : vector<1x128xi32> to vector<128x128xi32>
    %59 = arith.cmpi eq, %9, %58 : vector<128x128xi32>
    %cst_16 = arith.constant 0.000000e+00 : f32
    %60 = vector.shape_cast %7 : vector<128x1xf32> to vector<128x1xf32>
    %61 = vector.broadcast %60 : vector<128x1xf32> to vector<128x128xf32>
    %62 = vector.broadcast %cst_16 : f32 to vector<128x128xf32>
    %63 = arith.select %59, %61, %62 : vector<128x128xi1>, vector<128x128xf32>
    %cst_17 = arith.constant dense<0.000000e+00> : vector<128xf32>
    %64 = vector.multi_reduction <add>, %63, %cst_17 [0] : vector<128x128xf32> to vector<128xf32>
    %65 = vector.shape_cast %64 : vector<128xf32> to vector<1x128xf32>
    %66 = arith.addf %57, %65 : vector<1x128xf32>
    %67 = vector.extract_strided_slice %3 {offsets = [3, 0], sizes = [1, 128], strides = [1, 1]} : vector<8x128xi32> to vector<1x128xi32>
    %68 = vector.extract_strided_slice %5 {offsets = [3, 0], sizes = [1, 128], strides = [1, 1]} : vector<8x128xi32> to vector<1x128xi32>
    %69 = vector.broadcast %67 : vector<1x128xi32> to vector<64x128xi32>
    %70 = arith.cmpi eq, %8, %69 : vector<64x128xi32>
    %cst_18 = arith.constant 0.000000e+00 : f32
    %71 = vector.shape_cast %6 : vector<64x1xf32> to vector<64x1xf32>
    %72 = vector.broadcast %71 : vector<64x1xf32> to vector<64x128xf32>
    %73 = vector.broadcast %cst_18 : f32 to vector<64x128xf32>
    %74 = arith.select %70, %72, %73 : vector<64x128xi1>, vector<64x128xf32>
    %cst_19 = arith.constant dense<0.000000e+00> : vector<128xf32>
    %75 = vector.multi_reduction <add>, %74, %cst_19 [0] : vector<64x128xf32> to vector<128xf32>
    %76 = vector.shape_cast %75 : vector<128xf32> to vector<1x128xf32>
    %77 = vector.broadcast %68 : vector<1x128xi32> to vector<128x128xi32>
    %78 = arith.cmpi eq, %9, %77 : vector<128x128xi32>
    %cst_20 = arith.constant 0.000000e+00 : f32
    %79 = vector.shape_cast %7 : vector<128x1xf32> to vector<128x1xf32>
    %80 = vector.broadcast %79 : vector<128x1xf32> to vector<128x128xf32>
    %81 = vector.broadcast %cst_20 : f32 to vector<128x128xf32>
    %82 = arith.select %78, %80, %81 : vector<128x128xi1>, vector<128x128xf32>
    %cst_21 = arith.constant dense<0.000000e+00> : vector<128xf32>
    %83 = vector.multi_reduction <add>, %82, %cst_21 [0] : vector<128x128xf32> to vector<128xf32>
    %84 = vector.shape_cast %83 : vector<128xf32> to vector<1x128xf32>
    %85 = arith.addf %76, %84 : vector<1x128xf32>
    %86 = vector.extract_strided_slice %3 {offsets = [4, 0], sizes = [1, 128], strides = [1, 1]} : vector<8x128xi32> to vector<1x128xi32>
    %87 = vector.extract_strided_slice %5 {offsets = [4, 0], sizes = [1, 128], strides = [1, 1]} : vector<8x128xi32> to vector<1x128xi32>
    %88 = vector.broadcast %86 : vector<1x128xi32> to vector<64x128xi32>
    %89 = arith.cmpi eq, %8, %88 : vector<64x128xi32>
    %cst_22 = arith.constant 0.000000e+00 : f32
    %90 = vector.shape_cast %6 : vector<64x1xf32> to vector<64x1xf32>
    %91 = vector.broadcast %90 : vector<64x1xf32> to vector<64x128xf32>
    %92 = vector.broadcast %cst_22 : f32 to vector<64x128xf32>
    %93 = arith.select %89, %91, %92 : vector<64x128xi1>, vector<64x128xf32>
    %cst_23 = arith.constant dense<0.000000e+00> : vector<128xf32>
    %94 = vector.multi_reduction <add>, %93, %cst_23 [0] : vector<64x128xf32> to vector<128xf32>
    %95 = vector.shape_cast %94 : vector<128xf32> to vector<1x128xf32>
    %96 = vector.broadcast %87 : vector<1x128xi32> to vector<128x128xi32>
    %97 = arith.cmpi eq, %9, %96 : vector<128x128xi32>
    %cst_24 = arith.constant 0.000000e+00 : f32
    %98 = vector.shape_cast %7 : vector<128x1xf32> to vector<128x1xf32>
    %99 = vector.broadcast %98 : vector<128x1xf32> to vector<128x128xf32>
    %100 = vector.broadcast %cst_24 : f32 to vector<128x128xf32>
    %101 = arith.select %97, %99, %100 : vector<128x128xi1>, vector<128x128xf32>
    %cst_25 = arith.constant dense<0.000000e+00> : vector<128xf32>
    %102 = vector.multi_reduction <add>, %101, %cst_25 [0] : vector<128x128xf32> to vector<128xf32>
    %103 = vector.shape_cast %102 : vector<128xf32> to vector<1x128xf32>
    %104 = arith.addf %95, %103 : vector<1x128xf32>
    %105 = vector.extract_strided_slice %3 {offsets = [5, 0], sizes = [1, 128], strides = [1, 1]} : vector<8x128xi32> to vector<1x128xi32>
    %106 = vector.extract_strided_slice %5 {offsets = [5, 0], sizes = [1, 128], strides = [1, 1]} : vector<8x128xi32> to vector<1x128xi32>
    %107 = vector.broadcast %105 : vector<1x128xi32> to vector<64x128xi32>
    %108 = arith.cmpi eq, %8, %107 : vector<64x128xi32>
    %cst_26 = arith.constant 0.000000e+00 : f32
    %109 = vector.shape_cast %6 : vector<64x1xf32> to vector<64x1xf32>
    %110 = vector.broadcast %109 : vector<64x1xf32> to vector<64x128xf32>
    %111 = vector.broadcast %cst_26 : f32 to vector<64x128xf32>
    %112 = arith.select %108, %110, %111 : vector<64x128xi1>, vector<64x128xf32>
    %cst_27 = arith.constant dense<0.000000e+00> : vector<128xf32>
    %113 = vector.multi_reduction <add>, %112, %cst_27 [0] : vector<64x128xf32> to vector<128xf32>
    %114 = vector.shape_cast %113 : vector<128xf32> to vector<1x128xf32>
    %115 = vector.broadcast %106 : vector<1x128xi32> to vector<128x128xi32>
    %116 = arith.cmpi eq, %9, %115 : vector<128x128xi32>
    %cst_28 = arith.constant 0.000000e+00 : f32
    %117 = vector.shape_cast %7 : vector<128x1xf32> to vector<128x1xf32>
    %118 = vector.broadcast %117 : vector<128x1xf32> to vector<128x128xf32>
    %119 = vector.broadcast %cst_28 : f32 to vector<128x128xf32>
    %120 = arith.select %116, %118, %119 : vector<128x128xi1>, vector<128x128xf32>
    %cst_29 = arith.constant dense<0.000000e+00> : vector<128xf32>
    %121 = vector.multi_reduction <add>, %120, %cst_29 [0] : vector<128x128xf32> to vector<128xf32>
    %122 = vector.shape_cast %121 : vector<128xf32> to vector<1x128xf32>
    %123 = arith.addf %114, %122 : vector<1x128xf32>
    %124 = vector.extract_strided_slice %3 {offsets = [6, 0], sizes = [1, 128], strides = [1, 1]} : vector<8x128xi32> to vector<1x128xi32>
    %125 = vector.extract_strided_slice %5 {offsets = [6, 0], sizes = [1, 128], strides = [1, 1]} : vector<8x128xi32> to vector<1x128xi32>
    %126 = vector.broadcast %124 : vector<1x128xi32> to vector<64x128xi32>
    %127 = arith.cmpi eq, %8, %126 : vector<64x128xi32>
    %cst_30 = arith.constant 0.000000e+00 : f32
    %128 = vector.shape_cast %6 : vector<64x1xf32> to vector<64x1xf32>
    %129 = vector.broadcast %128 : vector<64x1xf32> to vector<64x128xf32>
    %130 = vector.broadcast %cst_30 : f32 to vector<64x128xf32>
    %131 = arith.select %127, %129, %130 : vector<64x128xi1>, vector<64x128xf32>
    %cst_31 = arith.constant dense<0.000000e+00> : vector<128xf32>
    %132 = vector.multi_reduction <add>, %131, %cst_31 [0] : vector<64x128xf32> to vector<128xf32>
    %133 = vector.shape_cast %132 : vector<128xf32> to vector<1x128xf32>
    %134 = vector.broadcast %125 : vector<1x128xi32> to vector<128x128xi32>
    %135 = arith.cmpi eq, %9, %134 : vector<128x128xi32>
    %cst_32 = arith.constant 0.000000e+00 : f32
    %136 = vector.shape_cast %7 : vector<128x1xf32> to vector<128x1xf32>
    %137 = vector.broadcast %136 : vector<128x1xf32> to vector<128x128xf32>
    %138 = vector.broadcast %cst_32 : f32 to vector<128x128xf32>
    %139 = arith.select %135, %137, %138 : vector<128x128xi1>, vector<128x128xf32>
    %cst_33 = arith.constant dense<0.000000e+00> : vector<128xf32>
    %140 = vector.multi_reduction <add>, %139, %cst_33 [0] : vector<128x128xf32> to vector<128xf32>
    %141 = vector.shape_cast %140 : vector<128xf32> to vector<1x128xf32>
    %142 = arith.addf %133, %141 : vector<1x128xf32>
    %143 = vector.extract_strided_slice %3 {offsets = [7, 0], sizes = [1, 128], strides = [1, 1]} : vector<8x128xi32> to vector<1x128xi32>
    %144 = vector.extract_strided_slice %5 {offsets = [7, 0], sizes = [1, 128], strides = [1, 1]} : vector<8x128xi32> to vector<1x128xi32>
    %145 = vector.broadcast %143 : vector<1x128xi32> to vector<64x128xi32>
    %146 = arith.cmpi eq, %8, %145 : vector<64x128xi32>
    %cst_34 = arith.constant 0.000000e+00 : f32
    %147 = vector.shape_cast %6 : vector<64x1xf32> to vector<64x1xf32>
    %148 = vector.broadcast %147 : vector<64x1xf32> to vector<64x128xf32>
    %149 = vector.broadcast %cst_34 : f32 to vector<64x128xf32>
    %150 = arith.select %146, %148, %149 : vector<64x128xi1>, vector<64x128xf32>
    %cst_35 = arith.constant dense<0.000000e+00> : vector<128xf32>
    %151 = vector.multi_reduction <add>, %150, %cst_35 [0] : vector<64x128xf32> to vector<128xf32>
    %152 = vector.shape_cast %151 : vector<128xf32> to vector<1x128xf32>
    %153 = vector.broadcast %144 : vector<1x128xi32> to vector<128x128xi32>
    %154 = arith.cmpi eq, %9, %153 : vector<128x128xi32>
    %cst_36 = arith.constant 0.000000e+00 : f32
    %155 = vector.shape_cast %7 : vector<128x1xf32> to vector<128x1xf32>
    %156 = vector.broadcast %155 : vector<128x1xf32> to vector<128x128xf32>
    %157 = vector.broadcast %cst_36 : f32 to vector<128x128xf32>
    %158 = arith.select %154, %156, %157 : vector<128x128xi1>, vector<128x128xf32>
    %cst_37 = arith.constant dense<0.000000e+00> : vector<128xf32>
    %159 = vector.multi_reduction <add>, %158, %cst_37 [0] : vector<128x128xf32> to vector<128xf32>
    %160 = vector.shape_cast %159 : vector<128xf32> to vector<1x128xf32>
    %161 = arith.addf %152, %160 : vector<1x128xf32>
    %162 = tpu.concatenate %28, %47, %66, %85, %104, %123, %142, %161 in 0 : vector<1x128xf32>, vector<1x128xf32>, vector<1x128xf32>, vector<1x128xf32>, vector<1x128xf32>, vector<1x128xf32>, vector<1x128xf32>, vector<1x128xf32> -> vector<8x128xf32>
    %c0_38 = arith.constant 0 : index
    %c0_39 = arith.constant 0 : index
    %c0_40 = arith.constant 0 : index
    %163 = vector.load %arg4[%c0_38, %c0_39, %c0_40] : memref<1x8x128xf32, #tpu.memory_space<vmem>>, vector<1x8x128xf32>
    %164 = vector.shape_cast %163 : vector<1x8x128xf32> to vector<8x128xf32>
    %165 = vector.shape_cast %162 : vector<8x128xf32> to vector<1x8x128xf32>
    tpu.vector_store %arg4[%c0_38, %c0_39, %c0_40], %165 {strides = array<i32>} : memref<1x8x128xf32, #tpu.memory_space<vmem>>, vector<1x8x128xf32>,
    return
  }
  func.func @transform_0(%arg0: i32) -> (i32, i32, i32, i32) {
    %c0_i32 = arith.constant 0 : i32
    %c0_i32_0 = arith.constant 0 : i32
    %c0_i32_1 = arith.constant 0 : i32
    %c0_i32_2 = arith.constant 0 : i32
    return %arg0, %c0_i32, %c0_i32_0, %c0_i32_1 : i32, i32, i32, i32
  }
  func.func @transform_1(%arg0: i32) -> (i32, i32) {
    %c0_i32 = arith.constant 0 : i32
    %c0_i32_0 = arith.constant 0 : i32
    %c0_i32_1 = arith.constant 0 : i32
    return %c0_i32, %c0_i32_0 : i32, i32
  }
  func.func @transform_2(%arg0: i32) -> (i32, i32) {
    %c0_i32 = arith.constant 0 : i32
    %c0_i32_0 = arith.constant 0 : i32
    %c0_i32_1 = arith.constant 0 : i32
    return %c0_i32, %c0_i32_0 : i32, i32
  }
  func.func @transform_3(%arg0: i32) -> (i32, i32, i32) {
    %c0_i32 = arith.constant 0 : i32
    %c0_i32_0 = arith.constant 0 : i32
    %c0_i32_1 = arith.constant 0 : i32
    return %arg0, %c0_i32, %c0_i32_0 : i32, i32, i32
  }
}

</mosaic_0001>

<llo_original>
// kernel: tpu_custom_call.1
$region0: #{tpu_custom_call.1}
  #allocation0 [shape = 'u32[]', space=smem, size = 0x4, offset = 0x4, fixed_abs, tag = 'smem constant byte address 0x4 - core index']
  #allocation1 [shape = 'u32[144,128]{1,0:T(1,128)}', space=vmem, size = 0x12000, scoped, tag = 'internal scratch']
  %s0 = inlined_call_operand.vmem [shape: s32[1,2,8,128], index: 0, kind: input, shape index: {}]
  %s1 = inlined_call_operand.vmem [shape: f32[64,1], index: 1, kind: input, shape index: {}]
  %s2 = inlined_call_operand.vmem [shape: f32[128,1], index: 2, kind: input, shape index: {}]
  %s3 = inlined_call_operand.hbm [shape: f32[1,8,128], index: 3, kind: output, shape index: {}]
  %s4 = sld [smem:[#allocation0]]
  $region22: #{tpu_custom_call.1} parent=0
    _
  %s6 = ssub.s32 1, %s4
  %s7 = scalar_select 0, %s6, %s4
  $region1: #{tpu_custom_call.1} parent=0
    #allocation2 [shape = 'u8[4096]{0}', space=vmem, size = 0x1000, scoped, tag = 'output window, operand 0, single buffered']
    #allocation3 [shape = 's32[1]{0}', space=sflag, size = 0x4, scoped, tag = 'scoped memory for tpu_custom_call.1']
    %8 = vsyncpa [#allocation3], 0
    // Predicated region
    $region2: #{tpu_custom_call.1} parent=1 // pred_check
      _
    $region3: #{tpu_custom_call.1} parent=1 // pred_check_branch
      %10 = sbr.rel (0) target = $region5
    $region4: #{tpu_custom_call.1} parent=1 // pred_region
      _
    $region5: #{tpu_custom_call.1} parent=1 // pred_fallthru
      _
    // Predicated region
    $region6: #{tpu_custom_call.1} parent=1 // pred_check
      _
    $region7: #{tpu_custom_call.1} parent=1 // pred_check_branch
      %12 = sbr.rel (0) target = $region9
    $region8: #{tpu_custom_call.1} parent=1 // pred_region
      _
    $region9: #{tpu_custom_call.1} parent=1 // pred_fallthru
      _
    // Predicated region
    $region10: #{tpu_custom_call.1} parent=1 // pred_check
      _
    $region11: #{tpu_custom_call.1} parent=1 // pred_check_branch
      %14 = sbr.rel (0) target = $region13
    $region12: #{tpu_custom_call.1} parent=1 // pred_region
      _
    $region13: #{tpu_custom_call.1} parent=1 // pred_fallthru
      _
    %v15 = vld [vmem:[%s0] sm:$0xff]
    %v16 = vld [vmem:[%s0 + $0x8] sm:$0xff]
    %v17 = vld [vmem:[%s1] sm:$0xff]
    %v18 = vld [vmem:[%s1 + $0x8] sm:$0xff]
    %v19 = vld [vmem:[%s1 + $0x10] sm:$0xff]
    %v20 = vld [vmem:[%s1 + $0x18] sm:$0xff]
    %v21 = vld [vmem:[%s1 + $0x20] sm:$0xff]
    %v22 = vld [vmem:[%s1 + $0x28] sm:$0xff]
    %v23 = vld [vmem:[%s1 + $0x30] sm:$0xff]
    %v24 = vld [vmem:[%s1 + $0x38] sm:$0xff]
    %v25 = vld [vmem:[%s2] sm:$0xff]
    %v26 = vld [vmem:[%s2 + $0x8] sm:$0xff]
    %v27 = vld [vmem:[%s2 + $0x10] sm:$0xff]
    %v28 = vld [vmem:[%s2 + $0x18] sm:$0xff]
    %v29 = vld [vmem:[%s2 + $0x20] sm:$0xff]
    %v30 = vld [vmem:[%s2 + $0x28] sm:$0xff]
    %v31 = vld [vmem:[%s2 + $0x30] sm:$0xff]
    %v32 = vld [vmem:[%s2 + $0x38] sm:$0xff]
    %v33 = vld [vmem:[%s2 + $0x40] sm:$0xff]
    %v34 = vld [vmem:[%s2 + $0x48] sm:$0xff]
    %v35 = vld [vmem:[%s2 + $0x50] sm:$0xff]
    %v36 = vld [vmem:[%s2 + $0x58] sm:$0xff]
    %v37 = vld [vmem:[%s2 + $0x60] sm:$0xff]
    %v38 = vld [vmem:[%s2 + $0x68] sm:$0xff]
    %v39 = vld [vmem:[%s2 + $0x70] sm:$0xff]
    %v40 = vld [vmem:[%s2 + $0x78] sm:$0xff]
    %v41 = vlaneseq
    %v42 = vshrl.u32 %v41, 7
    %v43 = vadd.s32 %v42, 8
    %v44 = vadd.s32 %v42, 16
    %v45 = vadd.s32 %v42, 24
    %v46 = vadd.s32 %v42, 32
    %v47 = vadd.s32 %v42, 40
    %v48 = vadd.s32 %v42, 48
    %v49 = vadd.s32 %v42, 56
    %v50 = vadd.s32 %v42, 64
    %v51 = vadd.s32 %v42, 72
    %v52 = vadd.s32 %v42, 80
    %v53 = vadd.s32 %v42, 88
    %v54 = vadd.s32 %v42, 96
    %v55 = vadd.s32 %v42, 104
    %v56 = vadd.s32 %v42, 112
    %v57 = vadd.s32 %v42, 120
    %v58 = vlaneseq
    %v59 = vshrl.u32 %v58, 7
    %v60 = vsub.s32 0, %v59
    %v61 = vrot.slane %v15, %v60
    %vm62 = vcmp.eq.s32.totalorder %v42, %v61
    %vm63 = vcmp.eq.s32.totalorder %v43, %v61
    %vm64 = vcmp.eq.s32.totalorder %v44, %v61
    %vm65 = vcmp.eq.s32.totalorder %v45, %v61
    %vm66 = vcmp.eq.s32.totalorder %v46, %v61
    %vm67 = vcmp.eq.s32.totalorder %v47, %v61
    %vm68 = vcmp.eq.s32.totalorder %v48, %v61
    %vm69 = vcmp.eq.s32.totalorder %v49, %v61
    %71 = vset.pattern.permute.xlu0 0
    %72 = vperm.xlu0 %71, %v17
    %v73 = vpop.permute.xlu0 %72
    %76 = vset.pattern.permute.xlu0 0
    %77 = vperm.xlu0 %76, %v18
    %v78 = vpop.permute.xlu0 %77
    %81 = vset.pattern.permute.xlu0 0
    %82 = vperm.xlu0 %81, %v19
    %v83 = vpop.permute.xlu0 %82
    %86 = vset.pattern.permute.xlu0 0
    %87 = vperm.xlu0 %86, %v20
    %v88 = vpop.permute.xlu0 %87
    %91 = vset.pattern.permute.xlu0 0
    %92 = vperm.xlu0 %91, %v21
    %v93 = vpop.permute.xlu0 %92
    %96 = vset.pattern.permute.xlu0 0
    %97 = vperm.xlu0 %96, %v22
    %v98 = vpop.permute.xlu0 %97
    %101 = vset.pattern.permute.xlu0 0
    %102 = vperm.xlu0 %101, %v23
    %v103 = vpop.permute.xlu0 %102
    %106 = vset.pattern.permute.xlu0 0
    %107 = vperm.xlu0 %106, %v24
    %v108 = vpop.permute.xlu0 %107
    %v110 = vsel %vm62, %v73, 0.0
    %v111 = vsel %vm63, %v78, 0.0
    %v112 = vsel %vm64, %v83, 0.0
    %v113 = vsel %vm65, %v88, 0.0
    %v114 = vsel %vm66, %v93, 0.0
    %v115 = vsel %vm67, %v98, 0.0
    %v116 = vsel %vm68, %v103, 0.0
    %v117 = vsel %vm69, %v108, 0.0
    %v118 = vadd.f32 %v110, %v111
    %v119 = vadd.f32 %v118, %v112
    %v120 = vadd.f32 %v119, %v113
    %v121 = vadd.f32 %v120, %v114
    %v122 = vadd.f32 %v121, %v115
    %v123 = vadd.f32 %v122, %v116
    %v124 = vadd.f32 %v123, %v117
    %v125 = vrot.slane %v124, 4
    %v126 = vadd.f32 %v124, %v125
    %v127 = vrot.slane %v126, 2
    %v128 = vadd.f32 %v126, %v127
    %v129 = vrot.slane %v128, 1
    %v130 = vadd.f32 %v128, %v129
    %v131 = vlaneseq
    %v132 = vshrl.u32 %v131, 7
    %v133 = vsub.s32 0, %v132
    %v134 = vrot.slane %v16, %v133
    %vm135 = vcmp.eq.s32.totalorder %v42, %v134
    %vm136 = vcmp.eq.s32.totalorder %v43, %v134
    %vm137 = vcmp.eq.s32.totalorder %v44, %v134
    %vm138 = vcmp.eq.s32.totalorder %v45, %v134
    %vm139 = vcmp.eq.s32.totalorder %v46, %v134
    %vm140 = vcmp.eq.s32.totalorder %v47, %v134
    %vm141 = vcmp.eq.s32.totalorder %v48, %v134
    %vm142 = vcmp.eq.s32.totalorder %v49, %v134
    %vm143 = vcmp.eq.s32.totalorder %v50, %v134
    %vm144 = vcmp.eq.s32.totalorder %v51, %v134
    %vm145 = vcmp.eq.s32.totalorder %v52, %v134
    %vm146 = vcmp.eq.s32.totalorder %v53, %v134
    %vm147 = vcmp.eq.s32.totalorder %v54, %v134
    %vm148 = vcmp.eq.s32.totalorder %v55, %v134
    %vm149 = vcmp.eq.s32.totalorder %v56, %v134
    %vm150 = vcmp.eq.s32.totalorder %v57, %v134
    %152 = vset.pattern.permute.xlu0 0
    %153 = vperm.xlu0 %152, %v25
    %v154 = vpop.permute.xlu0 %153
    %157 = vset.pattern.permute.xlu0 0
    %158 = vperm.xlu0 %157, %v26
    %v159 = vpop.permute.xlu0 %158
    %162 = vset.pattern.permute.xlu0 0
    %163 = vperm.xlu0 %162, %v27
    %v164 = vpop.permute.xlu0 %163
    %167 = vset.pattern.permute.xlu0 0
    %168 = vperm.xlu0 %167, %v28
    %v169 = vpop.permute.xlu0 %168
    %172 = vset.pattern.permute.xlu0 0
    %173 = vperm.xlu0 %172, %v29
    %v174 = vpop.permute.xlu0 %173
    %177 = vset.pattern.permute.xlu0 0
    %178 = vperm.xlu0 %177, %v30
    %v179 = vpop.permute.xlu0 %178
    %182 = vset.pattern.permute.xlu0 0
    %183 = vperm.xlu0 %182, %v31
    %v184 = vpop.permute.xlu0 %183
    %187 = vset.pattern.permute.xlu0 0
    %188 = vperm.xlu0 %187, %v32
    %v189 = vpop.permute.xlu0 %188
    %192 = vset.pattern.permute.xlu0 0
    %193 = vperm.xlu0 %192, %v33
    %v194 = vpop.permute.xlu0 %193
    %197 = vset.pattern.permute.xlu0 0
    %198 = vperm.xlu0 %197, %v34
    %v199 = vpop.permute.xlu0 %198
    %202 = vset.pattern.permute.xlu0 0
    %203 = vperm.xlu0 %202, %v35
    %v204 = vpop.permute.xlu0 %203
    %207 = vset.pattern.permute.xlu0 0
    %208 = vperm.xlu0 %207, %v36
    %v209 = vpop.permute.xlu0 %208
    %212 = vset.pattern.permute.xlu0 0
    %213 = vperm.xlu0 %212, %v37
    %v214 = vpop.permute.xlu0 %213
    %217 = vset.pattern.permute.xlu0 0
    %218 = vperm.xlu0 %217, %v38
    %v219 = vpop.permute.xlu0 %218
    %222 = vset.pattern.permute.xlu0 0
    %223 = vperm.xlu0 %222, %v39
    %v224 = vpop.permute.xlu0 %223
    %227 = vset.pattern.permute.xlu0 0
    %228 = vperm.xlu0 %227, %v40
    %v229 = vpop.permute.xlu0 %228
    %v231 = vsel %vm135, %v154, 0.0
    %v232 = vsel %vm136, %v159, 0.0
    %v233 = vsel %vm137, %v164, 0.0
    %v234 = vsel %vm138, %v169, 0.0
    %v235 = vsel %vm139, %v174, 0.0
    %v236 = vsel %vm140, %v179, 0.0
    %v237 = vsel %vm141, %v184, 0.0
    %v238 = vsel %vm142, %v189, 0.0
    %v239 = vsel %vm143, %v194, 0.0
    %v240 = vsel %vm144, %v199, 0.0
    %v241 = vsel %vm145, %v204, 0.0
    %v242 = vsel %vm146, %v209, 0.0
    %v243 = vsel %vm147, %v214, 0.0
    %v244 = vsel %vm148, %v219, 0.0
    %v245 = vsel %vm149, %v224, 0.0
    %v246 = vsel %vm150, %v229, 0.0
    %v247 = vadd.f32 %v231, %v232
    %v248 = vadd.f32 %v247, %v233
    %v249 = vadd.f32 %v248, %v234
    %v250 = vadd.f32 %v249, %v235
    %v251 = vadd.f32 %v250, %v236
    %v252 = vadd.f32 %v251, %v237
    %v253 = vadd.f32 %v252, %v238
    %v254 = vadd.f32 %v253, %v239
    %v255 = vadd.f32 %v254, %v240
    %v256 = vadd.f32 %v255, %v241
    %v257 = vadd.f32 %v256, %v242
    %v258 = vadd.f32 %v257, %v243
    %v259 = vadd.f32 %v258, %v244
    %v260 = vadd.f32 %v259, %v245
    %v261 = vadd.f32 %v260, %v246
    %v262 = vrot.slane %v261, 4
    %v263 = vadd.f32 %v261, %v262
    %v264 = vrot.slane %v263, 2
    %v265 = vadd.f32 %v263, %v264
    %v266 = vrot.slane %v265, 1
    %v267 = vadd.f32 %v265, %v266
    %v268 = vadd.f32 %v130, %v267
    %v269 = vlaneseq
    %v270 = vshrl.u32 %v269, 7
    %v271 = vsub.s32 1, %v270
    %v272 = vrot.slane %v15, %v271
    %vm273 = vcmp.eq.s32.totalorder %v42, %v272
    %vm274 = vcmp.eq.s32.totalorder %v43, %v272
    %vm275 = vcmp.eq.s32.totalorder %v44, %v272
    %vm276 = vcmp.eq.s32.totalorder %v45, %v272
    %vm277 = vcmp.eq.s32.totalorder %v46, %v272
    %vm278 = vcmp.eq.s32.totalorder %v47, %v272
    %vm279 = vcmp.eq.s32.totalorder %v48, %v272
    %vm280 = vcmp.eq.s32.totalorder %v49, %v272
    %v281 = vsel %vm273, %v73, 0.0
    %v282 = vsel %vm274, %v78, 0.0
    %v283 = vsel %vm275, %v83, 0.0
    %v284 = vsel %vm276, %v88, 0.0
    %v285 = vsel %vm277, %v93, 0.0
    %v286 = vsel %vm278, %v98, 0.0
    %v287 = vsel %vm279, %v103, 0.0
    %v288 = vsel %vm280, %v108, 0.0
    %v289 = vadd.f32 %v281, %v282
    %v290 = vadd.f32 %v289, %v283
    %v291 = vadd.f32 %v290, %v284
    %v292 = vadd.f32 %v291, %v285
    %v293 = vadd.f32 %v292, %v286
    %v294 = vadd.f32 %v293, %v287
    %v295 = vadd.f32 %v294, %v288
    %v296 = vrot.slane %v295, 4
    %v297 = vadd.f32 %v295, %v296
    %v298 = vrot.slane %v297, 2
    %v299 = vadd.f32 %v297, %v298
    %v300 = vrot.slane %v299, 1
    %v301 = vadd.f32 %v299, %v300
    %v302 = vlaneseq
    %v303 = vshrl.u32 %v302, 7
    %v304 = vsub.s32 1, %v303
    %v305 = vrot.slane %v16, %v304
    %vm306 = vcmp.eq.s32.totalorder %v42, %v305
    %vm307 = vcmp.eq.s32.totalorder %v43, %v305
    %vm308 = vcmp.eq.s32.totalorder %v44, %v305
    %vm309 = vcmp.eq.s32.totalorder %v45, %v305
    %vm310 = vcmp.eq.s32.totalorder %v46, %v305
    %vm311 = vcmp.eq.s32.totalorder %v47, %v305
    %vm312 = vcmp.eq.s32.totalorder %v48, %v305
    %vm313 = vcmp.eq.s32.totalorder %v49, %v305
    %vm314 = vcmp.eq.s32.totalorder %v50, %v305
    %vm315 = vcmp.eq.s32.totalorder %v51, %v305
    %vm316 = vcmp.eq.s32.totalorder %v52, %v305
    %vm317 = vcmp.eq.s32.totalorder %v53, %v305
    %vm318 = vcmp.eq.s32.totalorder %v54, %v305
    %vm319 = vcmp.eq.s32.totalorder %v55, %v305
    %vm320 = vcmp.eq.s32.totalorder %v56, %v305
    %vm321 = vcmp.eq.s32.totalorder %v57, %v305
    %v322 = vsel %vm306, %v154, 0.0
    %v323 = vsel %vm307, %v159, 0.0
    %v324 = vsel %vm308, %v164, 0.0
    %v325 = vsel %vm309, %v169, 0.0
    %v326 = vsel %vm310, %v174, 0.0
    %v327 = vsel %vm311, %v179, 0.0
    %v328 = vsel %vm312, %v184, 0.0
    %v329 = vsel %vm313, %v189, 0.0
    %v330 = vsel %vm314, %v194, 0.0
    %v331 = vsel %vm315, %v199, 0.0
    %v332 = vsel %vm316, %v204, 0.0
    %v333 = vsel %vm317, %v209, 0.0
    %v334 = vsel %vm318, %v214, 0.0
    %v335 = vsel %vm319, %v219, 0.0
    %v336 = vsel %vm320, %v224, 0.0
    %v337 = vsel %vm321, %v229, 0.0
    %v338 = vadd.f32 %v322, %v323
    %v339 = vadd.f32 %v338, %v324
    %v340 = vadd.f32 %v339, %v325
    %v341 = vadd.f32 %v340, %v326
    %v342 = vadd.f32 %v341, %v327
    %v343 = vadd.f32 %v342, %v328
    %v344 = vadd.f32 %v343, %v329
    %v345 = vadd.f32 %v344, %v330
    %v346 = vadd.f32 %v345, %v331
    %v347 = vadd.f32 %v346, %v332
    %v348 = vadd.f32 %v347, %v333
    %v349 = vadd.f32 %v348, %v334
    %v350 = vadd.f32 %v349, %v335
    %v351 = vadd.f32 %v350, %v336
    %v352 = vadd.f32 %v351, %v337
    %v353 = vrot.slane %v352, 4
    %v354 = vadd.f32 %v352, %v353
    %v355 = vrot.slane %v354, 2
    %v356 = vadd.f32 %v354, %v355
    %v357 = vrot.slane %v356, 1
    %v358 = vadd.f32 %v356, %v357
    %v359 = vadd.f32 %v301, %v358
    %v360 = vlaneseq
    %v361 = vshrl.u32 %v360, 7
    %v362 = vsub.s32 2, %v361
    %v363 = vrot.slane %v15, %v362
    %vm364 = vcmp.eq.s32.totalorder %v42, %v363
    %vm365 = vcmp.eq.s32.totalorder %v43, %v363
    %vm366 = vcmp.eq.s32.totalorder %v44, %v363
    %vm367 = vcmp.eq.s32.totalorder %v45, %v363
    %vm368 = vcmp.eq.s32.totalorder %v46, %v363
    %vm369 = vcmp.eq.s32.totalorder %v47, %v363
    %vm370 = vcmp.eq.s32.totalorder %v48, %v363
    %vm371 = vcmp.eq.s32.totalorder %v49, %v363
    %v372 = vsel %vm364, %v73, 0.0
    %v373 = vsel %vm365, %v78, 0.0
    %v374 = vsel %vm366, %v83, 0.0
    %v375 = vsel %vm367, %v88, 0.0
    %v376 = vsel %vm368, %v93, 0.0
    %v377 = vsel %vm369, %v98, 0.0
    %v378 = vsel %vm370, %v103, 0.0
    %v379 = vsel %vm371, %v108, 0.0
    %v380 = vadd.f32 %v372, %v373
    %v381 = vadd.f32 %v380, %v374
    %v382 = vadd.f32 %v381, %v375
    %v383 = vadd.f32 %v382, %v376
    %v384 = vadd.f32 %v383, %v377
    %v385 = vadd.f32 %v384, %v378
    %v386 = vadd.f32 %v385, %v379
    %v387 = vrot.slane %v386, 4
    %v388 = vadd.f32 %v386, %v387
    %v389 = vrot.slane %v388, 2
    %v390 = vadd.f32 %v388, %v389
    %v391 = vrot.slane %v390, 1
    %v392 = vadd.f32 %v390, %v391
    %v393 = vlaneseq
    %v394 = vshrl.u32 %v393, 7
    %v395 = vsub.s32 2, %v394
    %v396 = vrot.slane %v16, %v395
    %vm397 = vcmp.eq.s32.totalorder %v42, %v396
    %vm398 = vcmp.eq.s32.totalorder %v43, %v396
    %vm399 = vcmp.eq.s32.totalorder %v44, %v396
    %vm400 = vcmp.eq.s32.totalorder %v45, %v396
    %vm401 = vcmp.eq.s32.totalorder %v46, %v396
    %vm402 = vcmp.eq.s32.totalorder %v47, %v396
    %vm403 = vcmp.eq.s32.totalorder %v48, %v396
    %vm404 = vcmp.eq.s32.totalorder %v49, %v396
    %vm405 = vcmp.eq.s32.totalorder %v50, %v396
    %vm406 = vcmp.eq.s32.totalorder %v51, %v396
    %vm407 = vcmp.eq.s32.totalorder %v52, %v396
    %vm408 = vcmp.eq.s32.totalorder %v53, %v396
    %vm409 = vcmp.eq.s32.totalorder %v54, %v396
    %vm410 = vcmp.eq.s32.totalorder %v55, %v396
    %vm411 = vcmp.eq.s32.totalorder %v56, %v396
    %vm412 = vcmp.eq.s32.totalorder %v57, %v396
    %v413 = vsel %vm397, %v154, 0.0
    %v414 = vsel %vm398, %v159, 0.0
    %v415 = vsel %vm399, %v164, 0.0
    %v416 = vsel %vm400, %v169, 0.0
    %v417 = vsel %vm401, %v174, 0.0
    %v418 = vsel %vm402, %v179, 0.0
    %v419 = vsel %vm403, %v184, 0.0
    %v420 = vsel %vm404, %v189, 0.0
    %v421 = vsel %vm405, %v194, 0.0
    %v422 = vsel %vm406, %v199, 0.0
    %v423 = vsel %vm407, %v204, 0.0
    %v424 = vsel %vm408, %v209, 0.0
    %v425 = vsel %vm409, %v214, 0.0
    %v426 = vsel %vm410, %v219, 0.0
    %v427 = vsel %vm411, %v224, 0.0
    %v428 = vsel %vm412, %v229, 0.0
    %v429 = vadd.f32 %v413, %v414
    %v430 = vadd.f32 %v429, %v415
    %v431 = vadd.f32 %v430, %v416
    %v432 = vadd.f32 %v431, %v417
    %v433 = vadd.f32 %v432, %v418
    %v434 = vadd.f32 %v433, %v419
    %v435 = vadd.f32 %v434, %v420
    %v436 = vadd.f32 %v435, %v421
    %v437 = vadd.f32 %v436, %v422
    %v438 = vadd.f32 %v437, %v423
    %v439 = vadd.f32 %v438, %v424
    %v440 = vadd.f32 %v439, %v425
    %v441 = vadd.f32 %v440, %v426
    %v442 = vadd.f32 %v441, %v427
    %v443 = vadd.f32 %v442, %v428
    %v444 = vrot.slane %v443, 4
    %v445 = vadd.f32 %v443, %v444
    %v446 = vrot.slane %v445, 2
    %v447 = vadd.f32 %v445, %v446
    %v448 = vrot.slane %v447, 1
    %v449 = vadd.f32 %v447, %v448
    %v450 = vadd.f32 %v392, %v449
    %v451 = vlaneseq
    %v452 = vshrl.u32 %v451, 7
    %v453 = vsub.s32 3, %v452
    %v454 = vrot.slane %v15, %v453
    %vm455 = vcmp.eq.s32.totalorder %v42, %v454
    %vm456 = vcmp.eq.s32.totalorder %v43, %v454
    %vm457 = vcmp.eq.s32.totalorder %v44, %v454
    %vm458 = vcmp.eq.s32.totalorder %v45, %v454
    %vm459 = vcmp.eq.s32.totalorder %v46, %v454
    %vm460 = vcmp.eq.s32.totalorder %v47, %v454
    %vm461 = vcmp.eq.s32.totalorder %v48, %v454
    %vm462 = vcmp.eq.s32.totalorder %v49, %v454
    %v463 = vsel %vm455, %v73, 0.0
    %v464 = vsel %vm456, %v78, 0.0
    %v465 = vsel %vm457, %v83, 0.0
    %v466 = vsel %vm458, %v88, 0.0
    %v467 = vsel %vm459, %v93, 0.0
    %v468 = vsel %vm460, %v98, 0.0
    %v469 = vsel %vm461, %v103, 0.0
    %v470 = vsel %vm462, %v108, 0.0
    %v471 = vadd.f32 %v463, %v464
    %v472 = vadd.f32 %v471, %v465
    %v473 = vadd.f32 %v472, %v466
    %v474 = vadd.f32 %v473, %v467
    %v475 = vadd.f32 %v474, %v468
    %v476 = vadd.f32 %v475, %v469
    %v477 = vadd.f32 %v476, %v470
    %v478 = vrot.slane %v477, 4
    %v479 = vadd.f32 %v477, %v478
    %v480 = vrot.slane %v479, 2
    %v481 = vadd.f32 %v479, %v480
    %v482 = vrot.slane %v481, 1
    %v483 = vadd.f32 %v481, %v482
    %v484 = vlaneseq
    %v485 = vshrl.u32 %v484, 7
    %v486 = vsub.s32 3, %v485
    %v487 = vrot.slane %v16, %v486
    %vm488 = vcmp.eq.s32.totalorder %v42, %v487
    %vm489 = vcmp.eq.s32.totalorder %v43, %v487
    %vm490 = vcmp.eq.s32.totalorder %v44, %v487
    %vm491 = vcmp.eq.s32.totalorder %v45, %v487
    %vm492 = vcmp.eq.s32.totalorder %v46, %v487
    %vm493 = vcmp.eq.s32.totalorder %v47, %v487
    %vm494 = vcmp.eq.s32.totalorder %v48, %v487
    %vm495 = vcmp.eq.s32.totalorder %v49, %v487
    %vm496 = vcmp.eq.s32.totalorder %v50, %v487
    %vm497 = vcmp.eq.s32.totalorder %v51, %v487
    %vm498 = vcmp.eq.s32.totalorder %v52, %v487
    %vm499 = vcmp.eq.s32.totalorder %v53, %v487
    %vm500 = vcmp.eq.s32.totalorder %v54, %v487
    %vm501 = vcmp.eq.s32.totalorder %v55, %v487
    %vm502 = vcmp.eq.s32.totalorder %v56, %v487
    %vm503 = vcmp.eq.s32.totalorder %v57, %v487
    %v504 = vsel %vm488, %v154, 0.0
    %v505 = vsel %vm489, %v159, 0.0
    %v506 = vsel %vm490, %v164, 0.0
    %v507 = vsel %vm491, %v169, 0.0
    %v508 = vsel %vm492, %v174, 0.0
    %v509 = vsel %vm493, %v179, 0.0
    %v510 = vsel %vm494, %v184, 0.0
    %v511 = vsel %vm495, %v189, 0.0
    %v512 = vsel %vm496, %v194, 0.0
    %v513 = vsel %vm497, %v199, 0.0
    %v514 = vsel %vm498, %v204, 0.0
    %v515 = vsel %vm499, %v209, 0.0
    %v516 = vsel %vm500, %v214, 0.0
    %v517 = vsel %vm501, %v219, 0.0
    %v518 = vsel %vm502, %v224, 0.0
    %v519 = vsel %vm503, %v229, 0.0
    %v520 = vadd.f32 %v504, %v505
    %v521 = vadd.f32 %v520, %v506
    %v522 = vadd.f32 %v521, %v507
    %v523 = vadd.f32 %v522, %v508
    %v524 = vadd.f32 %v523, %v509
    %v525 = vadd.f32 %v524, %v510
    %v526 = vadd.f32 %v525, %v511
    %v527 = vadd.f32 %v526, %v512
    %v528 = vadd.f32 %v527, %v513
    %v529 = vadd.f32 %v528, %v514
    %v530 = vadd.f32 %v529, %v515
    %v531 = vadd.f32 %v530, %v516
    %v532 = vadd.f32 %v531, %v517
    %v533 = vadd.f32 %v532, %v518
    %v534 = vadd.f32 %v533, %v519
    %v535 = vrot.slane %v534, 4
    %v536 = vadd.f32 %v534, %v535
    %v537 = vrot.slane %v536, 2
    %v538 = vadd.f32 %v536, %v537
    %v539 = vrot.slane %v538, 1
    %v540 = vadd.f32 %v538, %v539
    %v541 = vadd.f32 %v483, %v540
    %v542 = vlaneseq
    %v543 = vshrl.u32 %v542, 7
    %v544 = vsub.s32 4, %v543
    %v545 = vrot.slane %v15, %v544
    %vm546 = vcmp.eq.s32.totalorder %v42, %v545
    %vm547 = vcmp.eq.s32.totalorder %v43, %v545
    %vm548 = vcmp.eq.s32.totalorder %v44, %v545
    %vm549 = vcmp.eq.s32.totalorder %v45, %v545
    %vm550 = vcmp.eq.s32.totalorder %v46, %v545
    %vm551 = vcmp.eq.s32.totalorder %v47, %v545
    %vm552 = vcmp.eq.s32.totalorder %v48, %v545
    %vm553 = vcmp.eq.s32.totalorder %v49, %v545
    %v554 = vsel %vm546, %v73, 0.0
    %v555 = vsel %vm547, %v78, 0.0
    %v556 = vsel %vm548, %v83, 0.0
    %v557 = vsel %vm549, %v88, 0.0
    %v558 = vsel %vm550, %v93, 0.0
    %v559 = vsel %vm551, %v98, 0.0
    %v560 = vsel %vm552, %v103, 0.0
    %v561 = vsel %vm553, %v108, 0.0
    %v562 = vadd.f32 %v554, %v555
    %v563 = vadd.f32 %v562, %v556
    %v564 = vadd.f32 %v563, %v557
    %v565 = vadd.f32 %v564, %v558
    %v566 = vadd.f32 %v565, %v559
    %v567 = vadd.f32 %v566, %v560
    %v568 = vadd.f32 %v567, %v561
    %v569 = vrot.slane %v568, 4
    %v570 = vadd.f32 %v568, %v569
    %v571 = vrot.slane %v570, 2
    %v572 = vadd.f32 %v570, %v571
    %v573 = vrot.slane %v572, 1
    %v574 = vadd.f32 %v572, %v573
    %v575 = vlaneseq
    %v576 = vshrl.u32 %v575, 7
    %v577 = vsub.s32 4, %v576
    %v578 = vrot.slane %v16, %v577
    %vm579 = vcmp.eq.s32.totalorder %v42, %v578
    %vm580 = vcmp.eq.s32.totalorder %v43, %v578
    %vm581 = vcmp.eq.s32.totalorder %v44, %v578
    %vm582 = vcmp.eq.s32.totalorder %v45, %v578
    %vm583 = vcmp.eq.s32.totalorder %v46, %v578
    %vm584 = vcmp.eq.s32.totalorder %v47, %v578
    %vm585 = vcmp.eq.s32.totalorder %v48, %v578
    %vm586 = vcmp.eq.s32.totalorder %v49, %v578
    %vm587 = vcmp.eq.s32.totalorder %v50, %v578
    %vm588 = vcmp.eq.s32.totalorder %v51, %v578
    %vm589 = vcmp.eq.s32.totalorder %v52, %v578
    %vm590 = vcmp.eq.s32.totalorder %v53, %v578
    %vm591 = vcmp.eq.s32.totalorder %v54, %v578
    %vm592 = vcmp.eq.s32.totalorder %v55, %v578
    %vm593 = vcmp.eq.s32.totalorder %v56, %v578
    %vm594 = vcmp.eq.s32.totalorder %v57, %v578
    %v595 = vsel %vm579, %v154, 0.0
    %v596 = vsel %vm580, %v159, 0.0
    %v597 = vsel %vm581, %v164, 0.0
    %v598 = vsel %vm582, %v169, 0.0
    %v599 = vsel %vm583, %v174, 0.0
    %v600 = vsel %vm584, %v179, 0.0
    %v601 = vsel %vm585, %v184, 0.0
    %v602 = vsel %vm586, %v189, 0.0
    %v603 = vsel %vm587, %v194, 0.0
    %v604 = vsel %vm588, %v199, 0.0
    %v605 = vsel %vm589, %v204, 0.0
    %v606 = vsel %vm590, %v209, 0.0
    %v607 = vsel %vm591, %v214, 0.0
    %v608 = vsel %vm592, %v219, 0.0
    %v609 = vsel %vm593, %v224, 0.0
    %v610 = vsel %vm594, %v229, 0.0
    %v611 = vadd.f32 %v595, %v596
    %v612 = vadd.f32 %v611, %v597
    %v613 = vadd.f32 %v612, %v598
    %v614 = vadd.f32 %v613, %v599
    %v615 = vadd.f32 %v614, %v600
    %v616 = vadd.f32 %v615, %v601
    %v617 = vadd.f32 %v616, %v602
    %v618 = vadd.f32 %v617, %v603
    %v619 = vadd.f32 %v618, %v604
    %v620 = vadd.f32 %v619, %v605
    %v621 = vadd.f32 %v620, %v606
    %v622 = vadd.f32 %v621, %v607
    %v623 = vadd.f32 %v622, %v608
    %v624 = vadd.f32 %v623, %v609
    %v625 = vadd.f32 %v624, %v610
    %v626 = vrot.slane %v625, 4
    %v627 = vadd.f32 %v625, %v626
    %v628 = vrot.slane %v627, 2
    %v629 = vadd.f32 %v627, %v628
    %v630 = vrot.slane %v629, 1
    %v631 = vadd.f32 %v629, %v630
    %v632 = vadd.f32 %v574, %v631
    %v633 = vlaneseq
    %v634 = vshrl.u32 %v633, 7
    %v635 = vsub.s32 5, %v634
    %v636 = vrot.slane %v15, %v635
    %vm637 = vcmp.eq.s32.totalorder %v42, %v636
    %vm638 = vcmp.eq.s32.totalorder %v43, %v636
    %vm639 = vcmp.eq.s32.totalorder %v44, %v636
    %vm640 = vcmp.eq.s32.totalorder %v45, %v636
    %vm641 = vcmp.eq.s32.totalorder %v46, %v636
    %vm642 = vcmp.eq.s32.totalorder %v47, %v636
    %vm643 = vcmp.eq.s32.totalorder %v48, %v636
    %vm644 = vcmp.eq.s32.totalorder %v49, %v636
    %v645 = vsel %vm637, %v73, 0.0
    %v646 = vsel %vm638, %v78, 0.0
    %v647 = vsel %vm639, %v83, 0.0
    %v648 = vsel %vm640, %v88, 0.0
    %v649 = vsel %vm641, %v93, 0.0
    %v650 = vsel %vm642, %v98, 0.0
    %v651 = vsel %vm643, %v103, 0.0
    %v652 = vsel %vm644, %v108, 0.0
    %v653 = vadd.f32 %v645, %v646
    %v654 = vadd.f32 %v653, %v647
    %v655 = vadd.f32 %v654, %v648
    %v656 = vadd.f32 %v655, %v649
    %v657 = vadd.f32 %v656, %v650
    %v658 = vadd.f32 %v657, %v651
    %v659 = vadd.f32 %v658, %v652
    %v660 = vrot.slane %v659, 4
    %v661 = vadd.f32 %v659, %v660
    %v662 = vrot.slane %v661, 2
    %v663 = vadd.f32 %v661, %v662
    %v664 = vrot.slane %v663, 1
    %v665 = vadd.f32 %v663, %v664
    %v666 = vlaneseq
    %v667 = vshrl.u32 %v666, 7
    %v668 = vsub.s32 5, %v667
    %v669 = vrot.slane %v16, %v668
    %vm670 = vcmp.eq.s32.totalorder %v42, %v669
    %vm671 = vcmp.eq.s32.totalorder %v43, %v669
    %vm672 = vcmp.eq.s32.totalorder %v44, %v669
    %vm673 = vcmp.eq.s32.totalorder %v45, %v669
    %vm674 = vcmp.eq.s32.totalorder %v46, %v669
    %vm675 = vcmp.eq.s32.totalorder %v47, %v669
    %vm676 = vcmp.eq.s32.totalorder %v48, %v669
    %vm677 = vcmp.eq.s32.totalorder %v49, %v669
    %vm678 = vcmp.eq.s32.totalorder %v50, %v669
    %vm679 = vcmp.eq.s32.totalorder %v51, %v669
    %vm680 = vcmp.eq.s32.totalorder %v52, %v669
    %vm681 = vcmp.eq.s32.totalorder %v53, %v669
    %vm682 = vcmp.eq.s32.totalorder %v54, %v669
    %vm683 = vcmp.eq.s32.totalorder %v55, %v669
    %vm684 = vcmp.eq.s32.totalorder %v56, %v669
    %vm685 = vcmp.eq.s32.totalorder %v57, %v669
    %v686 = vsel %vm670, %v154, 0.0
    %v687 = vsel %vm671, %v159, 0.0
    %v688 = vsel %vm672, %v164, 0.0
    %v689 = vsel %vm673, %v169, 0.0
    %v690 = vsel %vm674, %v174, 0.0
    %v691 = vsel %vm675, %v179, 0.0
    %v692 = vsel %vm676, %v184, 0.0
    %v693 = vsel %vm677, %v189, 0.0
    %v694 = vsel %vm678, %v194, 0.0
    %v695 = vsel %vm679, %v199, 0.0
    %v696 = vsel %vm680, %v204, 0.0
    %v697 = vsel %vm681, %v209, 0.0
    %v698 = vsel %vm682, %v214, 0.0
    %v699 = vsel %vm683, %v219, 0.0
    %v700 = vsel %vm684, %v224, 0.0
    %v701 = vsel %vm685, %v229, 0.0
    %v702 = vadd.f32 %v686, %v687
    %v703 = vadd.f32 %v702, %v688
    %v704 = vadd.f32 %v703, %v689
    %v705 = vadd.f32 %v704, %v690
    %v706 = vadd.f32 %v705, %v691
    %v707 = vadd.f32 %v706, %v692
    %v708 = vadd.f32 %v707, %v693
    %v709 = vadd.f32 %v708, %v694
    %v710 = vadd.f32 %v709, %v695
    %v711 = vadd.f32 %v710, %v696
    %v712 = vadd.f32 %v711, %v697
    %v713 = vadd.f32 %v712, %v698
    %v714 = vadd.f32 %v713, %v699
    %v715 = vadd.f32 %v714, %v700
    %v716 = vadd.f32 %v715, %v701
    %v717 = vrot.slane %v716, 4
    %v718 = vadd.f32 %v716, %v717
    %v719 = vrot.slane %v718, 2
    %v720 = vadd.f32 %v718, %v719
    %v721 = vrot.slane %v720, 1
    %v722 = vadd.f32 %v720, %v721
    %v723 = vadd.f32 %v665, %v722
    %v724 = vlaneseq
    %v725 = vshrl.u32 %v724, 7
    %v726 = vsub.s32 6, %v725
    %v727 = vrot.slane %v15, %v726
    %vm728 = vcmp.eq.s32.totalorder %v42, %v727
    %vm729 = vcmp.eq.s32.totalorder %v43, %v727
    %vm730 = vcmp.eq.s32.totalorder %v44, %v727
    %vm731 = vcmp.eq.s32.totalorder %v45, %v727
    %vm732 = vcmp.eq.s32.totalorder %v46, %v727
    %vm733 = vcmp.eq.s32.totalorder %v47, %v727
    %vm734 = vcmp.eq.s32.totalorder %v48, %v727
    %vm735 = vcmp.eq.s32.totalorder %v49, %v727
    %v736 = vsel %vm728, %v73, 0.0
    %v737 = vsel %vm729, %v78, 0.0
    %v738 = vsel %vm730, %v83, 0.0
    %v739 = vsel %vm731, %v88, 0.0
    %v740 = vsel %vm732, %v93, 0.0
    %v741 = vsel %vm733, %v98, 0.0
    %v742 = vsel %vm734, %v103, 0.0
    %v743 = vsel %vm735, %v108, 0.0
    %v744 = vadd.f32 %v736, %v737
    %v745 = vadd.f32 %v744, %v738
    %v746 = vadd.f32 %v745, %v739
    %v747 = vadd.f32 %v746, %v740
    %v748 = vadd.f32 %v747, %v741
    %v749 = vadd.f32 %v748, %v742
    %v750 = vadd.f32 %v749, %v743
    %v751 = vrot.slane %v750, 4
    %v752 = vadd.f32 %v750, %v751
    %v753 = vrot.slane %v752, 2
    %v754 = vadd.f32 %v752, %v753
    %v755 = vrot.slane %v754, 1
    %v756 = vadd.f32 %v754, %v755
    %v757 = vlaneseq
    %v758 = vshrl.u32 %v757, 7
    %v759 = vsub.s32 6, %v758
    %v760 = vrot.slane %v16, %v759
    %vm761 = vcmp.eq.s32.totalorder %v42, %v760
    %vm762 = vcmp.eq.s32.totalorder %v43, %v760
    %vm763 = vcmp.eq.s32.totalorder %v44, %v760
    %vm764 = vcmp.eq.s32.totalorder %v45, %v760
    %vm765 = vcmp.eq.s32.totalorder %v46, %v760
    %vm766 = vcmp.eq.s32.totalorder %v47, %v760
    %vm767 = vcmp.eq.s32.totalorder %v48, %v760
    %vm768 = vcmp.eq.s32.totalorder %v49, %v760
    %vm769 = vcmp.eq.s32.totalorder %v50, %v760
    %vm770 = vcmp.eq.s32.totalorder %v51, %v760
    %vm771 = vcmp.eq.s32.totalorder %v52, %v760
    %vm772 = vcmp.eq.s32.totalorder %v53, %v760
    %vm773 = vcmp.eq.s32.totalorder %v54, %v760
    %vm774 = vcmp.eq.s32.totalorder %v55, %v760
    %vm775 = vcmp.eq.s32.totalorder %v56, %v760
    %vm776 = vcmp.eq.s32.totalorder %v57, %v760
    %v777 = vsel %vm761, %v154, 0.0
    %v778 = vsel %vm762, %v159, 0.0
    %v779 = vsel %vm763, %v164, 0.0
    %v780 = vsel %vm764, %v169, 0.0
    %v781 = vsel %vm765, %v174, 0.0
    %v782 = vsel %vm766, %v179, 0.0
    %v783 = vsel %vm767, %v184, 0.0
    %v784 = vsel %vm768, %v189, 0.0
    %v785 = vsel %vm769, %v194, 0.0
    %v786 = vsel %vm770, %v199, 0.0
    %v787 = vsel %vm771, %v204, 0.0
    %v788 = vsel %vm772, %v209, 0.0
    %v789 = vsel %vm773, %v214, 0.0
    %v790 = vsel %vm774, %v219, 0.0
    %v791 = vsel %vm775, %v224, 0.0
    %v792 = vsel %vm776, %v229, 0.0
    %v793 = vadd.f32 %v777, %v778
    %v794 = vadd.f32 %v793, %v779
    %v795 = vadd.f32 %v794, %v780
    %v796 = vadd.f32 %v795, %v781
    %v797 = vadd.f32 %v796, %v782
    %v798 = vadd.f32 %v797, %v783
    %v799 = vadd.f32 %v798, %v784
    %v800 = vadd.f32 %v799, %v785
    %v801 = vadd.f32 %v800, %v786
    %v802 = vadd.f32 %v801, %v787
    %v803 = vadd.f32 %v802, %v788
    %v804 = vadd.f32 %v803, %v789
    %v805 = vadd.f32 %v804, %v790
    %v806 = vadd.f32 %v805, %v791
    %v807 = vadd.f32 %v806, %v792
    %v808 = vrot.slane %v807, 4
    %v809 = vadd.f32 %v807, %v808
    %v810 = vrot.slane %v809, 2
    %v811 = vadd.f32 %v809, %v810
    %v812 = vrot.slane %v811, 1
    %v813 = vadd.f32 %v811, %v812
    %v814 = vadd.f32 %v756, %v813
    %v815 = vlaneseq
    %v816 = vshrl.u32 %v815, 7
    %v817 = vsub.s32 7, %v816
    %v818 = vrot.slane %v15, %v817
    %vm819 = vcmp.eq.s32.totalorder %v42, %v818
    %vm820 = vcmp.eq.s32.totalorder %v43, %v818
    %vm821 = vcmp.eq.s32.totalorder %v44, %v818
    %vm822 = vcmp.eq.s32.totalorder %v45, %v818
    %vm823 = vcmp.eq.s32.totalorder %v46, %v818
    %vm824 = vcmp.eq.s32.totalorder %v47, %v818
    %vm825 = vcmp.eq.s32.totalorder %v48, %v818
    %vm826 = vcmp.eq.s32.totalorder %v49, %v818
    %v827 = vsel %vm819, %v73, 0.0
    %v828 = vsel %vm820, %v78, 0.0
    %v829 = vsel %vm821, %v83, 0.0
    %v830 = vsel %vm822, %v88, 0.0
    %v831 = vsel %vm823, %v93, 0.0
    %v832 = vsel %vm824, %v98, 0.0
    %v833 = vsel %vm825, %v103, 0.0
    %v834 = vsel %vm826, %v108, 0.0
    %v835 = vadd.f32 %v827, %v828
    %v836 = vadd.f32 %v835, %v829
    %v837 = vadd.f32 %v836, %v830
    %v838 = vadd.f32 %v837, %v831
    %v839 = vadd.f32 %v838, %v832
    %v840 = vadd.f32 %v839, %v833
    %v841 = vadd.f32 %v840, %v834
    %v842 = vrot.slane %v841, 4
    %v843 = vadd.f32 %v841, %v842
    %v844 = vrot.slane %v843, 2
    %v845 = vadd.f32 %v843, %v844
    %v846 = vrot.slane %v845, 1
    %v847 = vadd.f32 %v845, %v846
    %v848 = vlaneseq
    %v849 = vshrl.u32 %v848, 7
    %v850 = vsub.s32 7, %v849
    %v851 = vrot.slane %v16, %v850
    %vm852 = vcmp.eq.s32.totalorder %v42, %v851
    %vm853 = vcmp.eq.s32.totalorder %v43, %v851
    %vm854 = vcmp.eq.s32.totalorder %v44, %v851
    %vm855 = vcmp.eq.s32.totalorder %v45, %v851
    %vm856 = vcmp.eq.s32.totalorder %v46, %v851
    %vm857 = vcmp.eq.s32.totalorder %v47, %v851
    %vm858 = vcmp.eq.s32.totalorder %v48, %v851
    %vm859 = vcmp.eq.s32.totalorder %v49, %v851
    %vm860 = vcmp.eq.s32.totalorder %v50, %v851
    %vm861 = vcmp.eq.s32.totalorder %v51, %v851
    %vm862 = vcmp.eq.s32.totalorder %v52, %v851
    %vm863 = vcmp.eq.s32.totalorder %v53, %v851
    %vm864 = vcmp.eq.s32.totalorder %v54, %v851
    %vm865 = vcmp.eq.s32.totalorder %v55, %v851
    %vm866 = vcmp.eq.s32.totalorder %v56, %v851
    %vm867 = vcmp.eq.s32.totalorder %v57, %v851
    %v868 = vsel %vm852, %v154, 0.0
    %v869 = vsel %vm853, %v159, 0.0
    %v870 = vsel %vm854, %v164, 0.0
    %v871 = vsel %vm855, %v169, 0.0
    %v872 = vsel %vm856, %v174, 0.0
    %v873 = vsel %vm857, %v179, 0.0
    %v874 = vsel %vm858, %v184, 0.0
    %v875 = vsel %vm859, %v189, 0.0
    %v876 = vsel %vm860, %v194, 0.0
    %v877 = vsel %vm861, %v199, 0.0
    %v878 = vsel %vm862, %v204, 0.0
    %v879 = vsel %vm863, %v209, 0.0
    %v880 = vsel %vm864, %v214, 0.0
    %v881 = vsel %vm865, %v219, 0.0
    %v882 = vsel %vm866, %v224, 0.0
    %v883 = vsel %vm867, %v229, 0.0
    %v884 = vadd.f32 %v868, %v869
    %v885 = vadd.f32 %v884, %v870
    %v886 = vadd.f32 %v885, %v871
    %v887 = vadd.f32 %v886, %v872
    %v888 = vadd.f32 %v887, %v873
    %v889 = vadd.f32 %v888, %v874
    %v890 = vadd.f32 %v889, %v875
    %v891 = vadd.f32 %v890, %v876
    %v892 = vadd.f32 %v891, %v877
    %v893 = vadd.f32 %v892, %v878
    %v894 = vadd.f32 %v893, %v879
    %v895 = vadd.f32 %v894, %v880
    %v896 = vadd.f32 %v895, %v881
    %v897 = vadd.f32 %v896, %v882
    %v898 = vadd.f32 %v897, %v883
    %v899 = vrot.slane %v898, 4
    %v900 = vadd.f32 %v898, %v899
    %v901 = vrot.slane %v900, 2
    %v902 = vadd.f32 %v900, %v901
    %v903 = vrot.slane %v902, 1
    %v904 = vadd.f32 %v902, %v903
    %v905 = vadd.f32 %v847, %v904
    %vm906 = vcmask 1040384
    %v907 = vsel %vm906, %v268, %v359
    %vm908 = vcmask 1041408
    %v909 = vsel %vm908, %v907, %v450
    %vm910 = vcmask 1042432
    %v911 = vsel %vm910, %v909, %v541
    %vm912 = vcmask 1043456
    %v913 = vsel %vm912, %v911, %v632
    %vm914 = vcmask 1044480
    %v915 = vsel %vm914, %v913, %v723
    %vm916 = vcmask 1045504
    %v917 = vsel %vm916, %v915, %v814
    %vm918 = vcmask 1046528
    %v919 = vsel %vm918, %v917, %v905
    %920 = vst [vmem:[#allocation2] sm:$0xff] %v919
    // Predicated region
    $region14: #{tpu_custom_call.1} parent=1 // pred_check
      _
    $region15: #{tpu_custom_call.1} parent=1 // pred_check_branch
      %922 = sbr.rel (0) target = $region17
    $region16: #{tpu_custom_call.1} parent=1 // pred_region
      %s924 = ssub.s32 128, 128
      %925 = vsyncadd [#allocation3], %s924
      %s927 = sshll.u32 [#allocation2], 4
      %s928 = int_to_ptr.vmem [resolvable:$true] %s927
      %930 = dma.vmem_to_hbm [thread:$0]  %s928, 128, %s3, [#allocation3]
    $region17: #{tpu_custom_call.1} parent=1 // pred_fallthru
      _
    // Predicated region
    $region18: #{tpu_custom_call.1} parent=1 // pred_check
      _
    $region19: #{tpu_custom_call.1} parent=1 // pred_check_branch
      %932 = sbr.rel (0) target = $region21
    $region20: #{tpu_custom_call.1} parent=1 // pred_region
      %933 = dma.done [#allocation3], 128
    $region21: #{tpu_custom_call.1} parent=1 // pred_fallthru
      _
    %934 = vsyncpa [#allocation3], 1

</llo_original>
